<compile_context>
chip_gen: v6e
topology: v6e:2x2x1
jax: 0.10.0
libtpu: 0.0.40
codegen_flags: <defaults>
</compile_context>

<pallas_src>
import math
import functools

import jax
import jax.numpy as jnp
from jax import lax
from jax.experimental import pallas as pl
from jax.experimental.pallas import tpu as pltpu


def _round_up(x, m):
    return (x + m - 1) // m * m


# ---------------------------------------------------------------------------
# Path A: whole embedding table resident in VMEM, in-VMEM row gather.
# ---------------------------------------------------------------------------
def _embed_vmem_kernel(ids_ref, lut_ref, o_ref, *, scale, tokens_per_tile):
    # ids_ref: SMEM (BS_pad,) int32 (scalar prefetch)
    # lut_ref: (V, D) VMEM block (constant index_map -> fetched once)
    # o_ref:   (T, D) VMEM output tile
    tile = pl.program_id(0)
    base = tile * tokens_per_tile

    def gather_row(t, carry):
        tok = ids_ref[base + t]
        row = lut_ref[pl.ds(tok, 1), :]
        # Scale in f32 (exact even if the table is bf16), store in out dtype.
        o_ref[pl.ds(t, 1), :] = (row.astype(jnp.float32) * scale).astype(o_ref.dtype)
        return carry

    lax.fori_loop(0, tokens_per_tile, gather_row, 0)


# ---------------------------------------------------------------------------
# Path B: table stays in HBM; manual per-row DMA gather, double-buffered
#         across token tiles (next tile's row DMAs overlap current compute).
# ---------------------------------------------------------------------------
def _embed_dma_kernel(ids_ref, lut_hbm, o_ref, row_buf, copy_sem, *,
                      scale, tokens_per_tile):
    # row_buf : (2, T, D) VMEM scratch (double buffer)
    # copy_sem: DMA semaphores, one per slot
    tile = pl.program_id(0)
    n_tiles = pl.num_programs(0)
    slot = tile % 2

    def issue_tile(tile_idx, dst_slot):
        base = tile_idx * tokens_per_tile

        def issue(t, carry):
            tok = ids_ref[base + t]
            pltpu.make_async_copy(
                lut_hbm.at[pl.ds(tok, 1), :],
                row_buf.at[dst_slot, pl.ds(t, 1), :],
                copy_sem.at[dst_slot],
            ).start()
            return carry

        lax.fori_loop(0, tokens_per_tile, issue, 0)

    # Prime the pipeline on the very first tile.
    @pl.when(tile == 0)
    def _():
        issue_tile(0, 0)

    # Prefetch the next tile's rows into the other slot.
    @pl.when(tile + 1 < n_tiles)
    def _():
        issue_tile(tile + 1, 1 - slot)

    # Drain this tile's T row copies (each wait retires one row-sized DMA).
    def drain(t, carry):
        pltpu.make_async_copy(
            lut_hbm.at[pl.ds(0, 1), :],
            row_buf.at[slot, pl.ds(0, 1), :],
            copy_sem.at[slot],
        ).wait()
        return carry

    lax.fori_loop(0, tokens_per_tile, drain, 0)

    # Dense (T, D) scale + store; output writeback is pipelined by Pallas.
    o_ref[...] = (row_buf[slot].astype(jnp.float32) * scale).astype(o_ref.dtype)


# ---------------------------------------------------------------------------
# Wrapper
# ---------------------------------------------------------------------------
def embeddings_forward(x, lut, d_model, *, tokens_per_tile=None,
                       force_dma_gather=False):
    """x: (B, S) int token ids; lut: (V, D). Returns lut[x] * sqrt(d_model)."""
    B, S = x.shape
    V, D = lut.shape
    assert D == d_model, "lut second dim must equal d_model"
    assert D % 128 == 0, "d_model must be a multiple of 128 (TPU lane width)"

    out_dtype = lut.dtype
    itemsize = jnp.dtype(lut.dtype).itemsize
    sublane = {4: 8, 2: 16, 1: 32}.get(itemsize, 8)

    BS = B * S
    if tokens_per_tile is None:
        # 256 tokens/step amortizes the per-grid-step cost and yields dense
        # (T, D) stores. (On v7x's faster HBM, 512-1024 is also reasonable.)
        tokens_per_tile = 256
    T = _round_up(min(tokens_per_tile, _round_up(BS, sublane)), sublane)
    BS_pad = _round_up(BS, T)
    n_tiles = BS_pad // T

    # Clamp token ids: an OOB id would otherwise index past the table.
    ids = jnp.clip(x.reshape(BS).astype(jnp.int32), 0, V - 1)
    if BS_pad != BS:
        ids = jnp.concatenate([ids, jnp.zeros((BS_pad - BS,), jnp.int32)])

    scale = float(math.sqrt(d_model))

    table_bytes = V * D * itemsize
    out_tile_bytes = T * D * jnp.dtype(out_dtype).itemsize
    # Conservative VMEM estimate: resident table (x2 in case the pipeline
    # double-buffers it) + double-buffered output tiles + headroom.
    vmem_needed = 2 * table_bytes + 2 * out_tile_bytes + (2 << 20)
    # Gate at 40 MiB so the table-in-VMEM path is safe on v7x (64 MiB VMEM/TC)
    # as well as on v5e/v6e (128 MiB).
    fits_in_vmem = (vmem_needed <= 40 * 2**20) and not force_dma_gather

    if fits_in_vmem:
        vmem_limit = None
        if vmem_needed > 16 * 2**20:     # above v5e's default scoped limit
            vmem_limit = int(min(vmem_needed * 5 // 4, 48 * 2**20))
        out_flat = pl.pallas_call(
            functools.partial(_embed_vmem_kernel, scale=scale, tokens_per_tile=T),
            out_shape=jax.ShapeDtypeStruct((BS_pad, D), out_dtype),
            grid_spec=pltpu.PrefetchScalarGridSpec(
                num_scalar_prefetch=1,            # token ids land in SMEM
                grid=(n_tiles,),                  # one grid step per T tokens
                in_specs=[
                    # Whole table as one block with a constant index_map:
                    # fetched HBM->VMEM once, resident across all tiles.
                    pl.BlockSpec((V, D), lambda i, ids: (0, 0)),
                ],
                out_specs=pl.BlockSpec((T, D), lambda i, ids: (i, 0)),
            ),
            compiler_params=pltpu.CompilerParams(
                # Token tiles are independent -> both TensorCores on v7x.
                dimension_semantics=("parallel",),
                vmem_limit_bytes=vmem_limit,
            ),
        )(ids, lut)
    else:
        out_flat = pl.pallas_call(
            functools.partial(_embed_dma_kernel, scale=scale, tokens_per_tile=T),
            out_shape=jax.ShapeDtypeStruct((BS_pad, D), out_dtype),
            grid_spec=pltpu.PrefetchScalarGridSpec(
                num_scalar_prefetch=1,
                grid=(n_tiles,),
                in_specs=[pl.BlockSpec(memory_space=pl.ANY)],   # lut stays in HBM
                out_specs=pl.BlockSpec((T, D), lambda i, ids: (i, 0)),
                scratch_shapes=[
                    pltpu.VMEM((2, T, D), lut.dtype),        # row double-buffer
                    pltpu.SemaphoreType.DMA((2,)),           # one sem per slot
                ],
            ),
            compiler_params=pltpu.CompilerParams(
                # Manual cross-step double-buffering assumes sequential tiles.
                # TODO(synk): per-core pipeline priming so this path can use
                # "parallel" and both v7x TensorCores.
                dimension_semantics=("arbitrary",),
            ),
        )(ids, lut)

    return out_flat[:BS].reshape(B, S, D)


if __name__ == "__main__":
    # Small, deterministic setup consistent with the PyTorch module.
    batch, seq = 2, 8
    d_model, vocab_size = 128, 64

    key = jax.random.PRNGKey(0)
    k_ids, k_w = jax.random.split(key)

    # nn.Embedding default init: N(0, 1)
    lut = jax.random.normal(k_w, (vocab_size, d_model), dtype=jnp.float32)
    x = jax.random.randint(k_ids, (batch, seq), minval=0, maxval=vocab_size,
                           dtype=jnp.int32)

    ref = lut[x] * math.sqrt(d_model)

    # Fast path: table cached in VMEM, in-VMEM row gather.
    out = jax.block_until_ready(embeddings_forward(x, lut, d_model))
    assert out.shape == (batch, seq, d_model)
    assert jnp.allclose(out, ref, atol=1e-5, rtol=1e-5)

    # Large-table fallback: manual double-buffered per-row DMA gather.
    out_dma = jax.block_until_ready(
        embeddings_forward(x, lut, d_model, force_dma_gather=True))
    assert jnp.allclose(out_dma, ref, atol=1e-5, rtol=1e-5)

    print("KERNEL_OK")
</pallas_src>

<mosaic_0001>
module attributes {stable_mosaic.version = 11 : i64} {
  func.func @_embed_vmem_kernel(%arg0: i32, %arg1: memref<16xi32, #tpu.memory_space<smem>>, %arg2: memref<64x128xf32, #tpu.memory_space<vmem>>, %arg3: memref<16x128xf32, #tpu.memory_space<vmem>>) attributes {dimension_semantics = [#tpu.dimension_semantics<parallel>], iteration_bounds = array<i64: 1>, scalar_prefetch = 1 : i64, scratch_operands = 0 : i64, tpu.core_type = #tpu.core_type<tc>, window_params = [{pipeline_mode = #tpu.pipeline_mode<synchronous>, transform_indices = @transform_0, window_bounds = array<i64: 64, 128>}, {transform_indices = @transform_1, window_bounds = array<i64: 16, 128>}]} {
    %c16_i32 = arith.constant 16 : i32
    %0 = arith.muli %arg0, %c16_i32 : i32
    %c0_i32 = arith.constant 0 : i32
    %c16_i32_0 = arith.constant 16 : i32
    %1 = arith.addi %c0_i32, %c16_i32_0 : i32
    %c1_i32 = arith.constant 1 : i32
    scf.for %arg4 = %c0_i32 to %1 step %c1_i32  : i32 {
      %2 = arith.addi %0, %arg4 : i32
      %3 = arith.index_cast %2 : i32 to index
      %4 = memref.load %arg1[%3] : memref<16xi32, #tpu.memory_space<smem>>
      %5 = arith.index_cast %4 : i32 to index
      %c0 = arith.constant 0 : index
      %6 = vector.load %arg2[%5, %c0] : memref<64x128xf32, #tpu.memory_space<vmem>>, vector<1x128xf32>
      %cst = arith.constant 11.3137083 : f32
      %7 = vector.broadcast %cst : f32 to vector<1x128xf32>
      %8 = arith.mulf %6, %7 : vector<1x128xf32>
      %9 = arith.index_cast %arg4 : i32 to index
      %c0_2 = arith.constant 0 : index
      %10 = vector.load %arg3[%9, %c0_2] : memref<16x128xf32, #tpu.memory_space<vmem>>, vector<1x128xf32>
      tpu.vector_store %arg3[%9, %c0_2], %8 {strides = array<i32>} : memref<16x128xf32, #tpu.memory_space<vmem>>, vector<1x128xf32>,
    }
    %c16_i32_1 = arith.constant 16 : i32
    return
  }
  func.func @transform_0(%arg0: i32, %arg1: memref<16xi32, #tpu.memory_space<smem>>) -> (i32, i32) {
    %c0_i32 = arith.constant 0 : i32
    %c0_i32_0 = arith.constant 0 : i32
    %c0_i32_1 = arith.constant 0 : i32
    return %c0_i32, %c0_i32_0 : i32, i32
  }
  func.func @transform_1(%arg0: i32, %arg1: memref<16xi32, #tpu.memory_space<smem>>) -> (i32, i32) {
    %c0_i32 = arith.constant 0 : i32
    %c0_i32_0 = arith.constant 0 : i32
    return %arg0, %c0_i32 : i32, i32
  }
}

</mosaic_0001>

<llo_original>
// kernel: tpu_custom_call.1
$region0: #{tpu_custom_call.1}
  #allocation0 [shape = 'u32[]', space=smem, size = 0x4, offset = 0x4, fixed_abs, tag = 'smem constant byte address 0x4 - core index']
  #allocation1 [shape = 'u32[144,128]{1,0:T(1,128)}', space=vmem, size = 0x12000, scoped, tag = 'internal scratch']
  #allocation2 [shape = 's32[1]{0}', space=sflag, size = 0x4, scoped, tag = 'scoped memory for tpu_custom_call.1']
  #allocation3 [shape = 'u8[512]{0}', space=smem, size = 0x200, scoped, tag = 'prefetched SMEM operand 0']
  %s0 = inlined_call_operand.hbm [shape: s32[16], index: 0, kind: input, shape index: {}]
  %s1 = inlined_call_operand.hbm [shape: f32[64,128], index: 1, kind: input, shape index: {}]
  %s2 = inlined_call_operand.hbm [shape: f32[16,128], index: 2, kind: output, shape index: {}]
  %s3 = sld [smem:[#allocation0]]
  $region25: #{tpu_custom_call.1} parent=0
    _
  %s5 = ssub.s32 1, %s3
  %s6 = scalar_select 0, %s5, %s3
  %8 = dma.hbm_to_smem %s0, 16, [#allocation3], [#allocation2]
  %9 = dma.done [#allocation2], 16
  %10 = sfence
  $region1: #{tpu_custom_call.1} parent=0
    #allocation4 [shape = 'u8[32768]{0}', space=vmem, size = 0x8000, scoped, tag = 'input window, operand 1, single buffered']
    #allocation5 [shape = 's32[1]{0}', space=sflag, size = 0x4, scoped, tag = 'scoped memory for tpu_custom_call.1']
    #allocation6 [shape = 's32[1]{0}', space=sflag, size = 0x4, scoped, tag = 'scoped memory for tpu_custom_call.1']
    #allocation7 [shape = 'u8[8192]{0}', space=vmem, size = 0x2000, scoped, tag = 'output window, operand 0, single buffered']
    %11 = vsyncpa [#allocation5], 0
    %12 = vsyncpa [#allocation6], 0
    // Predicated region
    $region2: #{tpu_custom_call.1} parent=1 // pred_check
      _
    $region3: #{tpu_custom_call.1} parent=1 // pred_check_branch
      %14 = sbr.rel (0) target = $region5
    $region4: #{tpu_custom_call.1} parent=1 // pred_region
      %s16 = ssub.s32 1024, 1024
      %17 = vsyncadd [#allocation5], %s16
      %s18 = sshll.u32 [#allocation4], 4
      %s19 = int_to_ptr.vmem [resolvable:$true] %s18
      %24 = dma.hbm_to_vmem [thread:$0]  %s1, 1024, %s19, [#allocation5], 128, 128, 8
    $region5: #{tpu_custom_call.1} parent=1 // pred_fallthru
      _
    // Predicated region
    $region6: #{tpu_custom_call.1} parent=1 // pred_check
      _
    $region7: #{tpu_custom_call.1} parent=1 // pred_check_branch
      %26 = sbr.rel (0) target = $region9
    $region8: #{tpu_custom_call.1} parent=1 // pred_region
      %27 = dma.done [#allocation5], 1024
    $region9: #{tpu_custom_call.1} parent=1 // pred_fallthru
      _
    %s28 = smul.u32 0, 16
    loop: start=0, step=1, limit=16
    $region10: #{tpu_custom_call.1} parent=1 // loop_pre_header
      _
    $region11: #{tpu_custom_call.1} parent=1 // loop_header
      %s30 = sphi 0, %s34
      %p31 = scmp.ge.s32.totalorder %s30, 16
    $region12: #{tpu_custom_call.1} parent=1 // loop_header_branch
      %33 = sbr.rel (%p31) target = $region16
    $region13: #{tpu_custom_call.1} parent=1 // loop_body
      %s35 = sadd.s32 %s28, %s30
      %s36 = sld [smem:[#allocation3 + %s35]]
      %s37 = scalar_lea.vmem [#allocation4], %s36
      %v38 = vld [vmem:[%s37] sm:$0x1]
      %v39 = vmul.f32 %v38, 11.313708
      %s40 = scalar_lea.vmem [#allocation7], %s30
      %41 = vst [vmem:[%s40] sm:$0x1] %v39
    $region14: #{tpu_custom_call.1} parent=1 // loop_footer
      %s34 = sadd.s32 1, %s30
    $region15: #{tpu_custom_call.1} parent=1 // loop_footer_branch
      %29 = sbr.rel target = $region11
    $region16: #{tpu_custom_call.1} parent=1 // loop_exit
      _
    // Predicated region
    $region17: #{tpu_custom_call.1} parent=1 // pred_check
      _
    $region18: #{tpu_custom_call.1} parent=1 // pred_check_branch
      %43 = sbr.rel (0) target = $region20
    $region19: #{tpu_custom_call.1} parent=1 // pred_region
      %s45 = ssub.s32 256, 256
      %46 = vsyncadd [#allocation6], %s45
      %s47 = sshll.u32 [#allocation7], 4
      %s48 = int_to_ptr.vmem [resolvable:$true] %s47
      %53 = dma.vmem_to_hbm [thread:$0]  %s48, 256, %s2, [#allocation6], 128, 128, 8
    $region20: #{tpu_custom_call.1} parent=1 // pred_fallthru
      _
    // Predicated region
    $region21: #{tpu_custom_call.1} parent=1 // pred_check
      _
    $region22: #{tpu_custom_call.1} parent=1 // pred_check_branch
      %55 = sbr.rel (0) target = $region24
    $region23: #{tpu_custom_call.1} parent=1 // pred_region
      %56 = dma.done [#allocation6], 256
    $region24: #{tpu_custom_call.1} parent=1 // pred_fallthru
      _
    %57 = vsyncpa [#allocation5], 1
    %58 = vsyncpa [#allocation6], 1

</llo_original>
